<compile_context>
chip_gen: v7x
topology: tpu7x:2x2x1
jax: 0.10.0
libtpu: 0.0.40
codegen_flags: <defaults>
</compile_context>

<pallas_src>
import functools

import jax
import jax.numpy as jnp
from jax.experimental import pallas as pl
from jax.experimental.pallas import tpu as pltpu


KEY_ORDER = ("pprev", "prev", "next", "nnext")
DIRECTIONS = {"prev": 1, "next": -1, "pprev": 2, "nnext": -2}


# ------------------- kernel A: fused encoder + L-mean + stage-1 linear -------

def _encoder_kernel(x_ref, w1_ref, b1_ref, w2_ref, b2_ref, w4_ref, b4_ref,
                    feat_ref, m1_ref, a1_ref, *, L):
    rows = x_ref.shape[0]                     # tile_g * L
    D = w2_ref.shape[1]
    x = x_ref[...].astype(jnp.bfloat16)       # bf16 operands, f32 accumulation
    h = jnp.dot(x, w1_ref[...], preferred_element_type=jnp.float32) + b1_ref[...]
    h = jnp.maximum(h, 0.0)
    f = jnp.dot(h.astype(jnp.bfloat16), w2_ref[...],
                preferred_element_type=jnp.float32) + b2_ref[...]
    f = jnp.maximum(f, 0.0)                   # (rows, D) f32 == DeepEncoder out
    feat_ref[...] = f
    # per-group mean over L (linear/mean commute -> this is all stage 1 needs)
    m1 = jnp.mean(f.reshape(rows // L, L, D), axis=1)          # (tile_g, D)
    m1_ref[...] = m1
    # stage-1 context linear, all 4 directions fused -> lane-dense (tile_g, 4D)
    a1_ref[...] = jnp.dot(m1, w4_ref[...],
                          preferred_element_type=jnp.float32) + b4_ref[...]


def _pick_tile_g(num_groups, L, target_rows=512):
    """Groups per grid step: multiple of 8 (keeps 2-D blocks (8,128)-legal),
    ~target_rows rows per step, and >=2 grid blocks when num_groups >= 16 so
    both v7x TensorCores get work."""
    if num_groups < 8:
        return num_groups                     # single full-array block
    tg = max(8, ((target_rows // max(L, 1)) // 8) * 8)
    tg = min(tg, (num_groups // 8) * 8)
    if pl.cdiv(num_groups, tg) < 2 and num_groups >= 16:
        tg = max(8, ((num_groups // 2) // 8) * 8)
    return tg


def encoder_forward(x2d, w1, b1, w2, b2, w4, b4, *, L, tile_g):
    N, cin = x2d.shape
    BG = N // L
    D = w2.shape[1]
    grid = pl.cdiv(BG, tile_g)
    BGp = grid * tile_g
    if BGp != BG:                             # pad the tail instead of asserting
        x2d = jnp.pad(x2d, ((0, (BGp - BG) * L), (0, 0)))
    rows_t = tile_g * L
    feat, m1, a1 = pl.pallas_call(
        functools.partial(_encoder_kernel, L=L),
        out_shape=(jax.ShapeDtypeStruct((BGp * L, D), jnp.float32),
                   jax.ShapeDtypeStruct((BGp, D), jnp.float32),
                   jax.ShapeDtypeStruct((BGp, 4 * D), jnp.float32)),
        grid=(grid,),
        in_specs=[
            pl.BlockSpec((rows_t, cin), lambda i: (i, 0)),
            pl.BlockSpec((cin, D), lambda i: (0, 0)),    # resident weights
            pl.BlockSpec((1, D), lambda i: (0, 0)),
            pl.BlockSpec((D, D), lambda i: (0, 0)),
            pl.BlockSpec((1, D), lambda i: (0, 0)),
            pl.BlockSpec((D, 4 * D), lambda i: (0, 0)),
            pl.BlockSpec((1, 4 * D), lambda i: (0, 0)),
        ],
        out_specs=(pl.BlockSpec((rows_t, D), lambda i: (i, 0)),
                   pl.BlockSpec((tile_g, D), lambda i: (i, 0)),
                   pl.BlockSpec((tile_g, 4 * D), lambda i: (i, 0))),
        compiler_params=pltpu.CompilerParams(
            dimension_semantics=("parallel",)),
    )(x2d, w1, b1, w2, b2, w4, b4)
    return feat[:BG * L], m1[:BG], a1[:BG]


# ----------------------- kernel B: stage-2 context linear --------------------

def _stage2_kernel(m2_ref, w5_ref, b5_ref, o_ref):
    # [4 direction linears | global linear] fused -> lane-dense (BG, 5D)
    o_ref[...] = (jnp.dot(m2_ref[...], w5_ref[...],
                          preferred_element_type=jnp.float32) + b5_ref[...])


def stage2_forward(m2, w5, b5):
    BG, D = m2.shape
    C = w5.shape[1]
    return pl.pallas_call(
        _stage2_kernel,
        out_shape=jax.ShapeDtypeStruct((BG, C), jnp.float32),
        grid=(1,),
        in_specs=[pl.BlockSpec((BG, D), lambda i: (0, 0)),
                  pl.BlockSpec((D, C), lambda i: (0, 0)),
                  pl.BlockSpec((1, C), lambda i: (0, 0))],
        out_specs=pl.BlockSpec((BG, C), lambda i: (0, 0)),
    )(m2, w5, b5)


# ------------------------------- model glue ----------------------------------

def _roll_mask(ctx):
    """ctx: (B, G, 4, D), per-direction contexts in KEY_ORDER order.
    torch.roll(dir, dim=1) followed by zeroing the 'empty' slots equals a
    zero-filled shift along G (the zeroed slots are exactly the wrapped ones)."""
    B, G, ND, D = ctx.shape
    shifts = jnp.array([DIRECTIONS[d] for d in KEY_ORDER], dtype=jnp.int32)
    g = jnp.arange(G, dtype=jnp.int32)[:, None]               # (G, 1)
    src = g - shifts[None, :]                                 # (G, 4)
    valid = (src >= 0) & (src < G)
    src = jnp.clip(src, 0, G - 1)
    gathered = jnp.take_along_axis(ctx, src[None, :, :, None], axis=1)
    return jnp.where(valid[None, :, :, None], gathered, 0.0)


def temporal_encoder_global_ar(x, params):
    """x: (B, G, L, in_dim) -> (B, G, L+9, dim).  Stage 1 and stage 2 share the
    same context_linear weights, exactly as in the PyTorch module."""
    B, G, L, cin = x.shape
    D = params["enc_w1"].shape[1]
    BG = B * G

    w4 = jnp.concatenate([params["ctx_w"][d] for d in KEY_ORDER], axis=1)  # (D,4D)
    b4 = jnp.concatenate([params["ctx_b"][d] for d in KEY_ORDER], axis=0)  # (4D,)
    w5 = jnp.concatenate([w4, params["ctx_w"]["global"]], axis=1)          # (D,5D)
    b5 = jnp.concatenate([b4, params["ctx_b"]["global"]], axis=0)          # (5D,)

    tile_g = _pick_tile_g(BG, L)
    feat, m1, a1 = encoder_forward(
        x.reshape(BG * L, cin),
        params["enc_w1"].astype(jnp.bfloat16), params["enc_b1"][None, :],
        params["enc_w2"].astype(jnp.bfloat16), params["enc_b2"][None, :],
        w4, b4[None, :], L=L, tile_g=tile_g)

    m1 = m1.reshape(B, G, D)
    ctx1 = _roll_mask(a1.reshape(B, G, 4, D))                 # stage-1 contexts

    # mean over the L+4 rows of the (virtual) feat1: linear/mean commute, so
    # stage 2 only needs this (B, G, D) statistic -- feat1 never hits HBM.
    m2 = (ctx1.sum(axis=2) + jnp.float32(L) * m1) / jnp.float32(L + 4)

    a2g = stage2_forward(m2.reshape(BG, D), w5, b5[None, :])  # (BG, 5D)
    ctx2 = _roll_mask(a2g[:, :4 * D].reshape(B, G, 4, D))     # stage-2 contexts
    g_mean = jnp.mean(a2g[:, 4 * D:].reshape(B, G, D), axis=1)          # (B, D)
    g_row = jnp.broadcast_to(g_mean[:, None, None, :], (B, G, 1, D))

    feat = feat.reshape(B, G, L, D)
    # per (b, g) row order: [global, ctx2 dirs, ctx1 dirs, feat rows]
    return jnp.concatenate([g_row, ctx2, ctx1, feat], axis=2)  # (B, G, L+9, D)


# ------------------------------ parameter init -------------------------------

def init_params(key, in_dim, dim):
    ks = jax.random.split(key, 14)

    def lin(kw, kb, fan_in, fan_out):
        bound = 1.0 / jnp.sqrt(jnp.float32(fan_in))
        w = jax.random.uniform(kw, (fan_in, fan_out), jnp.float32, -bound, bound)
        b = jax.random.uniform(kb, (fan_out,), jnp.float32, -bound, bound)
        return w, b

    enc_w1, enc_b1 = lin(ks[0], ks[1], in_dim, dim)
    enc_w2, enc_b2 = lin(ks[2], ks[3], dim, dim)
    ctx_w, ctx_b = {}, {}
    for i, name in enumerate(KEY_ORDER + ("global",)):
        w, b = lin(ks[4 + 2 * i], ks[5 + 2 * i], dim, dim)
        ctx_w[name], ctx_b[name] = w, b
    return {"enc_w1": enc_w1, "enc_b1": enc_b1,
            "enc_w2": enc_w2, "enc_b2": enc_b2,
            "ctx_w": ctx_w, "ctx_b": ctx_b}


if __name__ == "__main__":
    B, G, L, in_dim, dim = 2, 4, 8, 16, 32
    key = jax.random.PRNGKey(0)
    kx, kp = jax.random.split(key)
    x = jax.random.normal(kx, (B, G, L, in_dim), dtype=jnp.float32)
    params = init_params(kp, in_dim, dim)

    out = jax.jit(temporal_encoder_global_ar)(x, params)
    out = jax.block_until_ready(out)
    assert out.shape == (B, G, L + 9, dim), out.shape
    assert out.dtype == jnp.float32
    print("KERNEL_OK")
</pallas_src>

<mosaic_0001>
module attributes {stable_mosaic.version = 11 : i64} {
  func.func @_stage2_kernel(%arg0: i32, %arg1: memref<8x32xf32, #tpu.memory_space<vmem>>, %arg2: memref<32x160xf32, #tpu.memory_space<vmem>>, %arg3: memref<1x160xf32, #tpu.memory_space<vmem>>, %arg4: memref<8x160xf32, #tpu.memory_space<vmem>>) attributes {dimension_semantics = [#tpu.dimension_semantics<arbitrary>], iteration_bounds = array<i64: 1>, scalar_prefetch = 0 : i64, scratch_operands = 0 : i64, tpu.core_type = #tpu.core_type<tc>, window_params = [{pipeline_mode = #tpu.pipeline_mode<synchronous>, transform_indices = @transform_0, window_bounds = array<i64: 8, 32>}, {pipeline_mode = #tpu.pipeline_mode<synchronous>, transform_indices = @transform_1, window_bounds = array<i64: 32, 160>}, {pipeline_mode = #tpu.pipeline_mode<synchronous>, transform_indices = @transform_2, window_bounds = array<i64: 1, 160>}, {pipeline_mode = #tpu.pipeline_mode<synchronous>, transform_indices = @transform_3, window_bounds = array<i64: 8, 160>}]} {
    %c0 = arith.constant 0 : index
    %c0_0 = arith.constant 0 : index
    %0 = vector.load %arg1[%c0, %c0_0] : memref<8x32xf32, #tpu.memory_space<vmem>>, vector<8x32xf32>
    %c0_1 = arith.constant 0 : index
    %c0_2 = arith.constant 0 : index
    %1 = vector.load %arg2[%c0_1, %c0_2] : memref<32x160xf32, #tpu.memory_space<vmem>>, vector<32x160xf32>
    %cst = arith.constant dense<0.000000e+00> : vector<8x160xf32>
    %2 = tpu.matmul %0, %1, %cst {dimension_numbers = #tpu.dot_dimension_numbers<[1], [0], [0], [1], [0, 0, 1, 1], [], []>} : vector<8x32xf32>, vector<32x160xf32>, vector<8x160xf32> -> vector<8x160xf32>
    %c0_3 = arith.constant 0 : index
    %c0_4 = arith.constant 0 : index
    %3 = vector.load %arg3[%c0_3, %c0_4] : memref<1x160xf32, #tpu.memory_space<vmem>>, vector<1x160xf32>
    %4 = vector.broadcast %3 : vector<1x160xf32> to vector<8x160xf32>
    %5 = arith.addf %2, %4 : vector<8x160xf32>
    %c0_5 = arith.constant 0 : index
    %c0_6 = arith.constant 0 : index
    %6 = vector.load %arg4[%c0_5, %c0_6] : memref<8x160xf32, #tpu.memory_space<vmem>>, vector<8x160xf32>
    tpu.vector_store %arg4[%c0_5, %c0_6], %5 {strides = array<i32>} : memref<8x160xf32, #tpu.memory_space<vmem>>, vector<8x160xf32>,
    return
  }
  func.func @transform_0(%arg0: i32) -> (i32, i32) {
    %c0_i32 = arith.constant 0 : i32
    %c0_i32_0 = arith.constant 0 : i32
    %c0_i32_1 = arith.constant 0 : i32
    return %c0_i32, %c0_i32_0 : i32, i32
  }
  func.func @transform_1(%arg0: i32) -> (i32, i32) {
    %c0_i32 = arith.constant 0 : i32
    %c0_i32_0 = arith.constant 0 : i32
    %c0_i32_1 = arith.constant 0 : i32
    return %c0_i32, %c0_i32_0 : i32, i32
  }
  func.func @transform_2(%arg0: i32) -> (i32, i32) {
    %c0_i32 = arith.constant 0 : i32
    %c0_i32_0 = arith.constant 0 : i32
    %c0_i32_1 = arith.constant 0 : i32
    return %c0_i32, %c0_i32_0 : i32, i32
  }
  func.func @transform_3(%arg0: i32) -> (i32, i32) {
    %c0_i32 = arith.constant 0 : i32
    %c0_i32_0 = arith.constant 0 : i32
    %c0_i32_1 = arith.constant 0 : i32
    return %c0_i32, %c0_i32_0 : i32, i32
  }
}

module attributes {stable_mosaic.version = 11 : i64} {
  func.func @_encoder_kernel(%arg0: i32, %arg1: memref<64x16xf32, #tpu.memory_space<vmem>>, %arg2: memref<16x32xbf16, #tpu.memory_space<vmem>>, %arg3: memref<1x32xf32, #tpu.memory_space<vmem>>, %arg4: memref<32x32xbf16, #tpu.memory_space<vmem>>, %arg5: memref<1x32xf32, #tpu.memory_space<vmem>>, %arg6: memref<32x128xf32, #tpu.memory_space<vmem>>, %arg7: memref<1x128xf32, #tpu.memory_space<vmem>>, %arg8: memref<64x32xf32, #tpu.memory_space<vmem>>, %arg9: memref<8x32xf32, #tpu.memory_space<vmem>>, %arg10: memref<8x128xf32, #tpu.memory_space<vmem>>) attributes {dimension_semantics = [#tpu.dimension_semantics<parallel>], iteration_bounds = array<i64: 1>, scalar_prefetch = 0 : i64, scratch_operands = 0 : i64, tpu.core_type = #tpu.core_type<tc>, window_params = [{transform_indices = @transform_0, window_bounds = array<i64: 64, 16>}, {pipeline_mode = #tpu.pipeline_mode<synchronous>, transform_indices = @transform_1, window_bounds = array<i64: 16, 32>}, {pipeline_mode = #tpu.pipeline_mode<synchronous>, transform_indices = @transform_2, window_bounds = array<i64: 1, 32>}, {pipeline_mode = #tpu.pipeline_mode<synchronous>, transform_indices = @transform_3, window_bounds = array<i64: 32, 32>}, {pipeline_mode = #tpu.pipeline_mode<synchronous>, transform_indices = @transform_4, window_bounds = array<i64: 1, 32>}, {pipeline_mode = #tpu.pipeline_mode<synchronous>, transform_indices = @transform_5, window_bounds = array<i64: 32, 128>}, {pipeline_mode = #tpu.pipeline_mode<synchronous>, transform_indices = @transform_6, window_bounds = array<i64: 1, 128>}, {transform_indices = @transform_7, window_bounds = array<i64: 64, 32>}, {transform_indices = @transform_8, window_bounds = array<i64: 8, 32>}, {transform_indices = @transform_9, window_bounds = array<i64: 8, 128>}]} {
    %c0 = arith.constant 0 : index
    %c0_0 = arith.constant 0 : index
    %0 = vector.load %arg1[%c0, %c0_0] : memref<64x16xf32, #tpu.memory_space<vmem>>, vector<64x16xf32>
    %1 = arith.truncf %0 : vector<64x16xf32> to vector<64x16xbf16>
    %c0_1 = arith.constant 0 : index
    %c0_2 = arith.constant 0 : index
    %2 = vector.load %arg2[%c0_1, %c0_2] : memref<16x32xbf16, #tpu.memory_space<vmem>>, vector<16x32xbf16>
    %cst = arith.constant dense<0.000000e+00> : vector<64x32xf32>
    %3 = tpu.matmul %1, %2, %cst {dimension_numbers = #tpu.dot_dimension_numbers<[1], [0], [0], [1], [0, 0, 1, 1], [], []>} : vector<64x16xbf16>, vector<16x32xbf16>, vector<64x32xf32> -> vector<64x32xf32>
    %c0_3 = arith.constant 0 : index
    %c0_4 = arith.constant 0 : index
    %4 = vector.load %arg3[%c0_3, %c0_4] : memref<1x32xf32, #tpu.memory_space<vmem>>, vector<1x32xf32>
    %5 = vector.broadcast %4 : vector<1x32xf32> to vector<64x32xf32>
    %6 = arith.addf %3, %5 : vector<64x32xf32>
    %cst_5 = arith.constant 0.000000e+00 : f32
    %7 = vector.broadcast %cst_5 : f32 to vector<64x32xf32>
    %8 = arith.maximumf %6, %7 : vector<64x32xf32>
    %9 = arith.truncf %8 : vector<64x32xf32> to vector<64x32xbf16>
    %c0_6 = arith.constant 0 : index
    %c0_7 = arith.constant 0 : index
    %10 = vector.load %arg4[%c0_6, %c0_7] : memref<32x32xbf16, #tpu.memory_space<vmem>>, vector<32x32xbf16>
    %cst_8 = arith.constant dense<0.000000e+00> : vector<64x32xf32>
    %11 = tpu.matmul %9, %10, %cst_8 {dimension_numbers = #tpu.dot_dimension_numbers<[1], [0], [0], [1], [0, 0, 1, 1], [], []>} : vector<64x32xbf16>, vector<32x32xbf16>, vector<64x32xf32> -> vector<64x32xf32>
    %c0_9 = arith.constant 0 : index
    %c0_10 = arith.constant 0 : index
    %12 = vector.load %arg5[%c0_9, %c0_10] : memref<1x32xf32, #tpu.memory_space<vmem>>, vector<1x32xf32>
    %13 = vector.broadcast %12 : vector<1x32xf32> to vector<64x32xf32>
    %14 = arith.addf %11, %13 : vector<64x32xf32>
    %cst_11 = arith.constant 0.000000e+00 : f32
    %15 = vector.broadcast %cst_11 : f32 to vector<64x32xf32>
    %16 = arith.maximumf %14, %15 : vector<64x32xf32>
    %c0_12 = arith.constant 0 : index
    %c0_13 = arith.constant 0 : index
    %17 = vector.load %arg8[%c0_12, %c0_13] : memref<64x32xf32, #tpu.memory_space<vmem>>, vector<64x32xf32>
    tpu.vector_store %arg8[%c0_12, %c0_13], %16 {strides = array<i32>} : memref<64x32xf32, #tpu.memory_space<vmem>>, vector<64x32xf32>,
    %18 = vector.shape_cast %16 : vector<64x32xf32> to vector<8x8x32xf32>
    %cst_14 = arith.constant dense<0.000000e+00> : vector<8x32xf32>
    %19 = vector.multi_reduction <add>, %18, %cst_14 [1] : vector<8x8x32xf32> to vector<8x32xf32>
    %cst_15 = arith.constant 8.000000e+00 : f32
    %20 = vector.broadcast %cst_15 : f32 to vector<8x32xf32>
    %21 = arith.divf %19, %20 : vector<8x32xf32>
    %c0_16 = arith.constant 0 : index
    %c0_17 = arith.constant 0 : index
    %22 = vector.load %arg9[%c0_16, %c0_17] : memref<8x32xf32, #tpu.memory_space<vmem>>, vector<8x32xf32>
    tpu.vector_store %arg9[%c0_16, %c0_17], %21 {strides = array<i32>} : memref<8x32xf32, #tpu.memory_space<vmem>>, vector<8x32xf32>,
    %c0_18 = arith.constant 0 : index
    %c0_19 = arith.constant 0 : index
    %23 = vector.load %arg6[%c0_18, %c0_19] : memref<32x128xf32, #tpu.memory_space<vmem>>, vector<32x128xf32>
    %cst_20 = arith.constant dense<0.000000e+00> : vector<8x128xf32>
    %24 = tpu.matmul %21, %23, %cst_20 {dimension_numbers = #tpu.dot_dimension_numbers<[1], [0], [0], [1], [0, 0, 1, 1], [], []>} : vector<8x32xf32>, vector<32x128xf32>, vector<8x128xf32> -> vector<8x128xf32>
    %c0_21 = arith.constant 0 : index
    %c0_22 = arith.constant 0 : index
    %25 = vector.load %arg7[%c0_21, %c0_22] : memref<1x128xf32, #tpu.memory_space<vmem>>, vector<1x128xf32>
    %26 = vector.broadcast %25 : vector<1x128xf32> to vector<8x128xf32>
    %27 = arith.addf %24, %26 : vector<8x128xf32>
    %c0_23 = arith.constant 0 : index
    %c0_24 = arith.constant 0 : index
    %28 = vector.load %arg10[%c0_23, %c0_24] : memref<8x128xf32, #tpu.memory_space<vmem>>, vector<8x128xf32>
    tpu.vector_store %arg10[%c0_23, %c0_24], %27 {strides = array<i32>} : memref<8x128xf32, #tpu.memory_space<vmem>>, vector<8x128xf32>,
    return
  }
  func.func @transform_0(%arg0: i32) -> (i32, i32) {
    %c0_i32 = arith.constant 0 : i32
    %c0_i32_0 = arith.constant 0 : i32
    return %arg0, %c0_i32 : i32, i32
  }
  func.func @transform_1(%arg0: i32) -> (i32, i32) {
    %c0_i32 = arith.constant 0 : i32
    %c0_i32_0 = arith.constant 0 : i32
    %c0_i32_1 = arith.constant 0 : i32
    return %c0_i32, %c0_i32_0 : i32, i32
  }
  func.func @transform_2(%arg0: i32) -> (i32, i32) {
    %c0_i32 = arith.constant 0 : i32
    %c0_i32_0 = arith.constant 0 : i32
    %c0_i32_1 = arith.constant 0 : i32
    return %c0_i32, %c0_i32_0 : i32, i32
  }
  func.func @transform_3(%arg0: i32) -> (i32, i32) {
    %c0_i32 = arith.constant 0 : i32
    %c0_i32_0 = arith.constant 0 : i32
    %c0_i32_1 = arith.constant 0 : i32
    return %c0_i32, %c0_i32_0 : i32, i32
  }
  func.func @transform_4(%arg0: i32) -> (i32, i32) {
    %c0_i32 = arith.constant 0 : i32
    %c0_i32_0 = arith.constant 0 : i32
    %c0_i32_1 = arith.constant 0 : i32
    return %c0_i32, %c0_i32_0 : i32, i32
  }
  func.func @transform_5(%arg0: i32) -> (i32, i32) {
    %c0_i32 = arith.constant 0 : i32
    %c0_i32_0 = arith.constant 0 : i32
    %c0_i32_1 = arith.constant 0 : i32
    return %c0_i32, %c0_i32_0 : i32, i32
  }
  func.func @transform_6(%arg0: i32) -> (i32, i32) {
    %c0_i32 = arith.constant 0 : i32
    %c0_i32_0 = arith.constant 0 : i32
    %c0_i32_1 = arith.constant 0 : i32
    return %c0_i32, %c0_i32_0 : i32, i32
  }
  func.func @transform_7(%arg0: i32) -> (i32, i32) {
    %c0_i32 = arith.constant 0 : i32
    %c0_i32_0 = arith.constant 0 : i32
    return %arg0, %c0_i32 : i32, i32
  }
  func.func @transform_8(%arg0: i32) -> (i32, i32) {
    %c0_i32 = arith.constant 0 : i32
    %c0_i32_0 = arith.constant 0 : i32
    return %arg0, %c0_i32 : i32, i32
  }
  func.func @transform_9(%arg0: i32) -> (i32, i32) {
    %c0_i32 = arith.constant 0 : i32
    %c0_i32_0 = arith.constant 0 : i32
    return %arg0, %c0_i32 : i32, i32
  }
}

</mosaic_0001>

<llo_original>
// kernel: temporal_encoder_global_ar.3
$region0: #{temporal_encoder_global_ar.3}
  #allocation0 [shape = 'u32[]', space=smem, size = 0x4, offset = 0x4, fixed_abs, tag = 'smem constant byte address 0x4 - core index']
  #allocation1 [shape = 'u32[144,128]{1,0:T(1,128)}', space=vmem, size = 0x12000, scoped, tag = 'internal scratch']
  %s0 = inlined_call_operand.vmem [shape: f32[8,32], index: 0, kind: input, shape index: {}]
  %s1 = inlined_call_operand.vmem [shape: f32[32,160], index: 1, kind: input, shape index: {}]
  %s2 = inlined_call_operand.vmem [shape: f32[1,160], index: 2, kind: input, shape index: {}]
  %s3 = inlined_call_operand.vmem [shape: f32[8,160], index: 3, kind: output, shape index: {}]
  %s4 = sld [smem:[#allocation0]]
  $region22: #{temporal_encoder_global_ar.3} parent=0
    _
  %s6 = ssub.s32 1, %s4
  %s7 = scalar_select 0, %s6, %s4
  // Predicated region
  $region2: #{temporal_encoder_global_ar.3} parent=0 // pred_check
    _
  $region3: #{temporal_encoder_global_ar.3} parent=0 // pred_check_branch
    %9 = sbr.rel (0) target = $region5
  $region4: #{temporal_encoder_global_ar.3} parent=0 // pred_region
    _
  $region5: #{temporal_encoder_global_ar.3} parent=0 // pred_fallthru
    _
  // Predicated region
  $region6: #{temporal_encoder_global_ar.3} parent=0 // pred_check
    _
  $region7: #{temporal_encoder_global_ar.3} parent=0 // pred_check_branch
    %11 = sbr.rel (0) target = $region9
  $region8: #{temporal_encoder_global_ar.3} parent=0 // pred_region
    _
  $region9: #{temporal_encoder_global_ar.3} parent=0 // pred_fallthru
    _
  // Predicated region
  $region10: #{temporal_encoder_global_ar.3} parent=0 // pred_check
    _
  $region11: #{temporal_encoder_global_ar.3} parent=0 // pred_check_branch
    %13 = sbr.rel (0) target = $region13
  $region12: #{temporal_encoder_global_ar.3} parent=0 // pred_region
    _
  $region13: #{temporal_encoder_global_ar.3} parent=0 // pred_fallthru
    _
  %v14 = vld [vmem:[%s0] sm:$0xff]
  %v15 = vld [vmem:[%s1] sm:$0xff]
  %v16 = vld [vmem:[%s1 + $0x8] sm:$0xff]
  %v17 = vld [vmem:[%s1 + $0x10] sm:$0xff]
  %v18 = vld [vmem:[%s1 + $0x18] sm:$0xff]
  %v19 = vld [vmem:[%s1 + $0x20] sm:$0xff]
  %v20 = vld [vmem:[%s1 + $0x28] sm:$0xff]
  %v21 = vld [vmem:[%s1 + $0x30] sm:$0xff]
  %v22 = vld [vmem:[%s1 + $0x38] sm:$0xff]
  %v23 = vld [vmem:[%s2] sm:$0x3]
  %v25 = vlaneseq
  %v26 = vshrl.u32 %v25, 7
  %v27 = vsub.s32 0, %v26
  %v28 = vrot.slane %v23, %v27
  %v29 = vlaneseq
  %v30 = vshrl.u32 %v29, 7
  %v31 = vsub.s32 1, %v30
  %v32 = vrot.slane %v23, %v31
  %vm35 = vcmask 261120
  %v37 = vsel %vm35, %v14, 0
  %39 = vmatprep.subr.mxu0 %v16
  %40 = vmatpush1.msra.mxu0 %v15
  %41 = vmatprep.subr.mxu0 %v18
  %42 = vmatpush1.msra.mxu0 %v17
  %43 = vmatprep.subr.mxu0 %v20
  %44 = vmatpush1.msra.mxu0 %v19
  %45 = vmatprep.subr.mxu0 %v22
  %46 = vmatpush1.msra.mxu0 %v21
  %47 = vmatprep.subr.mxu0 0.0
  %48 = vmatpush1.msra.mxu0 0.0
  %49 = vmatprep.subr.mxu0 0.0
  %50 = vmatpush1.msra.mxu0 0.0
  %51 = vmatprep.subr.mxu0 0.0
  %52 = vmatpush1.msra.mxu0 0.0
  %53 = vmatprep.subr.mxu0 0.0
  %54 = vmatpush1.msra.mxu0 0.0
  %55 = vmatprep.subr.mxu0 0.0
  %56 = vmatpush1.msra.mxu0 0.0
  %57 = vmatprep.subr.mxu0 0.0
  %58 = vmatpush1.msra.mxu0 0.0
  %59 = vmatprep.subr.mxu0 0.0
  %60 = vmatpush1.msra.mxu0 0.0
  %61 = vmatprep.subr.mxu0 0.0
  %62 = vmatpush1.msra.mxu0 0.0
  %63 = vmatprep.subr.mxu0 0.0
  %64 = vmatpush1.msra.mxu0 0.0
  %65 = vmatprep.subr.mxu0 0.0
  %66 = vmatpush1.msra.mxu0 0.0
  %67 = vmatprep.subr.mxu0 0.0
  %68 = vmatpush1.msra.mxu0 0.0
  %69 = vmatprep.subr.mxu0 0.0
  %70 = vmatpush1.msra.mxu0 0.0
  %71 = vmatprep.subr.mxu0 0.0
  %72 = vmatpush1.msra.mxu0 0.0
  %73 = vmatprep.subr.mxu0 0.0
  %74 = vmatpush1.msra.mxu0 0.0
  %75 = vmatprep.subr.mxu0 0.0
  %76 = vmatpush1.msra.mxu0 0.0
  %77 = vmatprep.subr.mxu0 0.0
  %78 = vmatpush1.msra.mxu0 0.0
  %79 = vmatprep.subr.mxu0 0.0
  %80 = vmatpush1.msra.mxu0 0.0
  %81 = vmatprep.subr.mxu0 0.0
  %82 = vmatpush1.msra.mxu0 0.0
  %83 = vmatprep.subr.mxu0 0.0
  %84 = vmatpush1.msra.mxu0 0.0
  %85 = vmatprep.subr.mxu0 0.0
  %86 = vmatpush1.msra.mxu0 0.0
  %87 = vmatprep.subr.mxu0 0.0
  %88 = vmatpush1.msra.mxu0 0.0
  %89 = vmatprep.subr.mxu0 0.0
  %90 = vmatpush1.msra.mxu0 0.0
  %91 = vmatprep.subr.mxu0 0.0
  %92 = vmatpush1.msra.mxu0 0.0
  %93 = vmatprep.subr.mxu0 0.0
  %94 = vmatpush1.msra.mxu0 0.0
  %95 = vmatprep.subr.mxu0 0.0
  %96 = vmatpush1.msra.mxu0 0.0
  %97 = vmatprep.subr.mxu0 0.0
  %98 = vmatpush1.msra.mxu0 0.0
  %99 = vmatprep.subr.mxu0 0.0
  %100 = vmatpush1.msra.mxu0 0.0
  %101 = vmatprep.subr.mxu0 0.0
  %102 = vmatpush1.msra.mxu0 0.0
  %103 = vmatprep.mubr.f32.mxu0 0.0
  %104 = vmatmul.mubr.f32.gmra.mrb[0].mxu0 %v37
  %v105 = vpop.f32.mrb[0].mxu0
  %v106 = vadd.f32 %v28, %v105
  %v107 = vpop.f32.mrb[0].mxu0
  %v108 = vadd.f32 %v32, %v107
  %109 = vdwg.mxu0
  %110 = vst [vmem:[%s3] sm:$0xff] %v106
  %111 = vst.msk [vmem:[%s3 + $0x8] sm:$0xff] %vm35, %v108
  // Predicated region
  $region14: #{temporal_encoder_global_ar.3} parent=0 // pred_check
    _
  $region15: #{temporal_encoder_global_ar.3} parent=0 // pred_check_branch
    %113 = sbr.rel (0) target = $region17
  $region16: #{temporal_encoder_global_ar.3} parent=0 // pred_region
    _
  $region17: #{temporal_encoder_global_ar.3} parent=0 // pred_fallthru
    _
  // Predicated region
  $region18: #{temporal_encoder_global_ar.3} parent=0 // pred_check
    _
  $region19: #{temporal_encoder_global_ar.3} parent=0 // pred_check_branch
    %115 = sbr.rel (0) target = $region21
  $region20: #{temporal_encoder_global_ar.3} parent=0 // pred_region
    _
  $region21: #{temporal_encoder_global_ar.3} parent=0 // pred_fallthru
    _

// kernel: temporal_encoder_global_ar.2
$region0: #{temporal_encoder_global_ar.2}
  #allocation0 [shape = 'u32[]', space=smem, size = 0x4, offset = 0x4, fixed_abs, tag = 'smem constant byte address 0x4 - core index']
  #allocation1 [shape = 'u32[144,128]{1,0:T(1,128)}', space=vmem, size = 0x12000, scoped, tag = 'internal scratch']
  %s0 = inlined_call_operand.vmem [shape: f32[64,16], index: 0, kind: input, shape index: {}]
  %s1 = inlined_call_operand.vmem [shape: bf16[16,32], index: 1, kind: input, shape index: {}]
  %s2 = inlined_call_operand.vmem [shape: f32[1,32], index: 2, kind: input, shape index: {}]
  %s3 = inlined_call_operand.vmem [shape: bf16[32,32], index: 3, kind: input, shape index: {}]
  %s4 = inlined_call_operand.vmem [shape: f32[1,32], index: 4, kind: input, shape index: {}]
  %s5 = inlined_call_operand.vmem [shape: f32[32,128], index: 5, kind: input, shape index: {}]
  %s6 = inlined_call_operand.vmem [shape: f32[1,128], index: 6, kind: input, shape index: {}]
  %s7 = inlined_call_operand.vmem [shape: f32[64,32], index: 7, kind: output, shape index: {0}]
  %s8 = inlined_call_operand.vmem [shape: f32[8,32], index: 8, kind: output, shape index: {1}]
  %s9 = inlined_call_operand.vmem [shape: f32[8,128], index: 9, kind: output, shape index: {2}]
  %10 = xla_tuple %s7, %s8, %s9
  %s11 = sld [smem:[#allocation0]]
  $region54: #{temporal_encoder_global_ar.2} parent=0
    _
  %s13 = ssub.s32 1, %s11
  %s14 = scalar_select 0, %s13, %s11
  // Predicated region
  $region2: #{temporal_encoder_global_ar.2} parent=0 // pred_check
    _
  $region3: #{temporal_encoder_global_ar.2} parent=0 // pred_check_branch
    %16 = sbr.rel (0) target = $region5
  $region4: #{temporal_encoder_global_ar.2} parent=0 // pred_region
    _
  $region5: #{temporal_encoder_global_ar.2} parent=0 // pred_fallthru
    _
  // Predicated region
  $region6: #{temporal_encoder_global_ar.2} parent=0 // pred_check
    _
  $region7: #{temporal_encoder_global_ar.2} parent=0 // pred_check_branch
    %18 = sbr.rel (0) target = $region9
  $region8: #{temporal_encoder_global_ar.2} parent=0 // pred_region
    _
  $region9: #{temporal_encoder_global_ar.2} parent=0 // pred_fallthru
    _
  // Predicated region
  $region10: #{temporal_encoder_global_ar.2} parent=0 // pred_check
    _
  $region11: #{temporal_encoder_global_ar.2} parent=0 // pred_check_branch
    %20 = sbr.rel (0) target = $region13
  $region12: #{temporal_encoder_global_ar.2} parent=0 // pred_region
    _
  $region13: #{temporal_encoder_global_ar.2} parent=0 // pred_fallthru
    _
  // Predicated region
  $region14: #{temporal_encoder_global_ar.2} parent=0 // pred_check
    _
  $region15: #{temporal_encoder_global_ar.2} parent=0 // pred_check_branch
    %22 = sbr.rel (0) target = $region17
  $region16: #{temporal_encoder_global_ar.2} parent=0 // pred_region
    _
  $region17: #{temporal_encoder_global_ar.2} parent=0 // pred_fallthru
    _
  // Predicated region
  $region18: #{temporal_encoder_global_ar.2} parent=0 // pred_check
    _
  $region19: #{temporal_encoder_global_ar.2} parent=0 // pred_check_branch
    %24 = sbr.rel (0) target = $region21
  $region20: #{temporal_encoder_global_ar.2} parent=0 // pred_region
    _
  $region21: #{temporal_encoder_global_ar.2} parent=0 // pred_fallthru
    _
  // Predicated region
  $region22: #{temporal_encoder_global_ar.2} parent=0 // pred_check
    _
  $region23: #{temporal_encoder_global_ar.2} parent=0 // pred_check_branch
    %26 = sbr.rel (0) target = $region25
  $region24: #{temporal_encoder_global_ar.2} parent=0 // pred_region
    _
  $region25: #{temporal_encoder_global_ar.2} parent=0 // pred_fallthru
    _
  // Predicated region
  $region26: #{temporal_encoder_global_ar.2} parent=0 // pred_check
    _
  $region27: #{temporal_encoder_global_ar.2} parent=0 // pred_check_branch
    %28 = sbr.rel (0) target = $region29
  $region28: #{temporal_encoder_global_ar.2} parent=0 // pred_region
    _
  $region29: #{temporal_encoder_global_ar.2} parent=0 // pred_fallthru
    _
  %v30 = vld [vmem:[%s0] sm:$0xff]
  %v31 = vld [vmem:[%s0 + $0x8] sm:$0xff]
  %v32 = vld [vmem:[%s0 + $0x10] sm:$0xff]
  %v33 = vld [vmem:[%s0 + $0x18] sm:$0xff]
  %v34 = vld [vmem:[%s0 + $0x20] sm:$0xff]
  %v35 = vld [vmem:[%s0 + $0x28] sm:$0xff]
  %v36 = vld [vmem:[%s0 + $0x30] sm:$0xff]
  %v37 = vld [vmem:[%s0 + $0x38] sm:$0xff]
  %v38 = vpack.c.bf16 %v31, %v30
  %v39 = vpack.c.bf16 %v33, %v32
  %v40 = vpack.c.bf16 %v35, %v34
  %v41 = vpack.c.bf16 %v37, %v36
  %v42 = vld [vmem:[%s1] sm:$0xf]
  %v43 = vld [vmem:[%s1 + $0x4] sm:$0xf]
  %v44 = vld [vmem:[%s2] sm:$0x1]
  %v46 = vlaneseq
  %v47 = vshrl.u32 %v46, 7
  %v48 = vsub.s32 0, %v47
  %v49 = vrot.slane %v44, %v48
  %v53 = vunpack.c.l.b16 %v42
  %v54 = vunpack.c.l.b16 %v43
  %v55 = vpack.c.b16 %v54, %v53
  %vm57 = vcmask 130048
  %v59 = vsel %vm57, %v38, 0
  %v62 = vsel %vm57, %v39, 0
  %v65 = vsel %vm57, %v40, 0
  %v68 = vsel %vm57, %v41, 0
  %70 = vmatprep.subr.bf16.mxu0 0
  %71 = vmatpush1.bf16.msra.mxu0 %v55
  %72 = vmatprep.subr.bf16.mxu0 0
  %73 = vmatpush1.bf16.msra.mxu0 0
  %74 = vmatprep.subr.bf16.mxu0 0
  %75 = vmatpush1.bf16.msra.mxu0 0
  %76 = vmatprep.subr.bf16.mxu0 0
  %77 = vmatpush1.bf16.msra.mxu0 0
  %78 = vmatprep.subr.bf16.mxu0 0
  %79 = vmatpush1.bf16.msra.mxu0 0
  %80 = vmatprep.subr.bf16.mxu0 0
  %81 = vmatpush1.bf16.msra.mxu0 0
  %82 = vmatprep.subr.bf16.mxu0 0
  %83 = vmatpush1.bf16.msra.mxu0 0
  %84 = vmatprep.subr.bf16.mxu0 0
  %85 = vmatpush1.bf16.msra.mxu0 0
  %86 = vmatprep.subr.bf16.mxu0 0
  %87 = vmatpush1.bf16.msra.mxu0 0
  %88 = vmatprep.subr.bf16.mxu0 0
  %89 = vmatpush1.bf16.msra.mxu0 0
  %90 = vmatprep.subr.bf16.mxu0 0
  %91 = vmatpush1.bf16.msra.mxu0 0
  %92 = vmatprep.subr.bf16.mxu0 0
  %93 = vmatpush1.bf16.msra.mxu0 0
  %94 = vmatprep.subr.bf16.mxu0 0
  %95 = vmatpush1.bf16.msra.mxu0 0
  %96 = vmatprep.subr.bf16.mxu0 0
  %97 = vmatpush1.bf16.msra.mxu0 0
  %98 = vmatprep.subr.bf16.mxu0 0
  %99 = vmatpush1.bf16.msra.mxu0 0
  %100 = vmatprep.subr.bf16.mxu0 0
  %101 = vmatpush1.bf16.msra.mxu0 0
  %102 = vmatprep.mubr.bf16.mxu0 0
  %103 = vmatmul.mubr.bf16.gmra.mrb[0].mxu0 %v59
  %v104 = vpop.f32.mrb[0].mxu0
  %v105 = vadd.f32 %v49, %v104
  %v106 = vpop.f32.mrb[0].mxu0
  %v107 = vpop.f32.mrb[0].mxu0
  %v108 = vadd.f32 %v49, %v107
  %v109 = vpop.f32.mrb[0].mxu0
  %110 = vmatprep.mubr.bf16.mxu0 0
  %111 = vmatmul.mubr.bf16.gmra.mrb[0].mxu0 %v62
  %v112 = vpop.f32.mrb[0].mxu0
  %v113 = vadd.f32 %v49, %v112
  %v114 = vpop.f32.mrb[0].mxu0
  %v115 = vpop.f32.mrb[0].mxu0
  %v116 = vadd.f32 %v49, %v115
  %v117 = vpop.f32.mrb[0].mxu0
  %118 = vmatprep.mubr.bf16.mxu0 0
  %119 = vmatmul.mubr.bf16.gmra.mrb[0].mxu0 %v65
  %v120 = vpop.f32.mrb[0].mxu0
  %v121 = vadd.f32 %v49, %v120
  %v122 = vpop.f32.mrb[0].mxu0
  %v123 = vpop.f32.mrb[0].mxu0
  %v124 = vadd.f32 %v49, %v123
  %v125 = vpop.f32.mrb[0].mxu0
  %126 = vmatprep.mubr.bf16.mxu0 0
  %127 = vmatmul.mubr.bf16.gmra.mrb[0].mxu0 %v68
  %v128 = vpop.f32.mrb[0].mxu0
  %v129 = vadd.f32 %v49, %v128
  %v130 = vpop.f32.mrb[0].mxu0
  %v131 = vpop.f32.mrb[0].mxu0
  %v132 = vadd.f32 %v49, %v131
  %v133 = vpop.f32.mrb[0].mxu0
  %134 = vdwg.mxu0
  %v135 = vmax.f32 %v105, 0.0
  %v136 = vmax.f32 %v108, 0.0
  %v137 = vmax.f32 %v113, 0.0
  %v138 = vmax.f32 %v116, 0.0
  %v139 = vmax.f32 %v121, 0.0
  %v140 = vmax.f32 %v124, 0.0
  %v141 = vmax.f32 %v129, 0.0
  %v142 = vmax.f32 %v132, 0.0
  %v143 = vpack.c.bf16 %v136, %v135
  %v144 = vpack.c.bf16 %v138, %v137
  %v145 = vpack.c.bf16 %v140, %v139
  %v146 = vpack.c.bf16 %v142, %v141
  %v147 = vld [vmem:[%s3] sm:$0xf]
  %v148 = vld [vmem:[%s3 + $0x4] sm:$0xf]
  %v149 = vld [vmem:[%s3 + $0x8] sm:$0xf]
  %v150 = vld [vmem:[%s3 + $0xc] sm:$0xf]
  %v151 = vld [vmem:[%s4] sm:$0x1]
  %v153 = vlaneseq
  %v154 = vshrl.u32 %v153, 7
  %v155 = vsub.s32 0, %v154
  %v156 = vrot.slane %v151, %v155
  %v162 = vunpack.c.l.b16 %v147
  %v163 = vunpack.c.l.b16 %v148
  %v164 = vunpack.c.l.b16 %v149
  %v165 = vunpack.c.l.b16 %v150
  %v166 = vpack.c.b16 %v163, %v162
  %v167 = vpack.c.b16 %v165, %v164
  %vm170 = vcmask 261120
  %v172 = vsel %vm170, %v143, 0
  %v175 = vsel %vm170, %v144, 0
  %v178 = vsel %vm170, %v145, 0
  %v181 = vsel %vm170, %v146, 0
  %183 = vmatprep.subr.bf16.mxu0 0
  %184 = vmatpush1.bf16.msra.mxu0 %v166
  %185 = vmatprep.subr.bf16.mxu0 0
  %186 = vmatpush1.bf16.msra.mxu0 %v167
  %187 = vmatprep.subr.bf16.mxu0 0
  %188 = vmatpush1.bf16.msra.mxu0 0
  %189 = vmatprep.subr.bf16.mxu0 0
  %190 = vmatpush1.bf16.msra.mxu0 0
  %191 = vmatprep.subr.bf16.mxu0 0
  %192 = vmatpush1.bf16.msra.mxu0 0
  %193 = vmatprep.subr.bf16.mxu0 0
  %194 = vmatpush1.bf16.msra.mxu0 0
  %195 = vmatprep.subr.bf16.mxu0 0
  %196 = vmatpush1.bf16.msra.mxu0 0
  %197 = vmatprep.subr.bf16.mxu0 0
  %198 = vmatpush1.bf16.msra.mxu0 0
  %199 = vmatprep.subr.bf16.mxu0 0
  %200 = vmatpush1.bf16.msra.mxu0 0
  %201 = vmatprep.subr.bf16.mxu0 0
  %202 = vmatpush1.bf16.msra.mxu0 0
  %203 = vmatprep.subr.bf16.mxu0 0
  %204 = vmatpush1.bf16.msra.mxu0 0
  %205 = vmatprep.subr.bf16.mxu0 0
  %206 = vmatpush1.bf16.msra.mxu0 0
  %207 = vmatprep.subr.bf16.mxu0 0
  %208 = vmatpush1.bf16.msra.mxu0 0
  %209 = vmatprep.subr.bf16.mxu0 0
  %210 = vmatpush1.bf16.msra.mxu0 0
  %211 = vmatprep.subr.bf16.mxu0 0
  %212 = vmatpush1.bf16.msra.mxu0 0
  %213 = vmatprep.subr.bf16.mxu0 0
  %214 = vmatpush1.bf16.msra.mxu0 0
  %215 = vmatprep.mubr.bf16.mxu0 0
  %216 = vmatmul.mubr.bf16.gmra.mrb[0].mxu0 %v172
  %v217 = vpop.f32.mrb[0].mxu0
  %v218 = vadd.f32 %v156, %v217
  %v219 = vpop.f32.mrb[0].mxu0
  %v220 = vpop.f32.mrb[0].mxu0
  %v221 = vadd.f32 %v156, %v220
  %v222 = vpop.f32.mrb[0].mxu0
  %223 = vmatprep.mubr.bf16.mxu0 0
  %224 = vmatmul.mubr.bf16.gmra.mrb[0].mxu0 %v175
  %v225 = vpop.f32.mrb[0].mxu0
  %v226 = vadd.f32 %v156, %v225
  %v227 = vpop.f32.mrb[0].mxu0
  %v228 = vpop.f32.mrb[0].mxu0
  %v229 = vadd.f32 %v156, %v228
  %v230 = vpop.f32.mrb[0].mxu0
  %231 = vmatprep.mubr.bf16.mxu0 0
  %232 = vmatmul.mubr.bf16.gmra.mrb[0].mxu0 %v178
  %v233 = vpop.f32.mrb[0].mxu0
  %v234 = vadd.f32 %v156, %v233
  %v235 = vpop.f32.mrb[0].mxu0
  %v236 = vpop.f32.mrb[0].mxu0
  %v237 = vadd.f32 %v156, %v236
  %v238 = vpop.f32.mrb[0].mxu0
  %239 = vmatprep.mubr.bf16.mxu0 0
  %240 = vmatmul.mubr.bf16.gmra.mrb[0].mxu0 %v181
  %v241 = vpop.f32.mrb[0].mxu0
  %v242 = vadd.f32 %v156, %v241
  %v243 = vpop.f32.mrb[0].mxu0
  %v244 = vpop.f32.mrb[0].mxu0
  %v245 = vadd.f32 %v156, %v244
  %v246 = vpop.f32.mrb[0].mxu0
  %247 = vdwg.mxu0
  %v248 = vmax.f32 %v218, 0.0
  %v249 = vmax.f32 %v221, 0.0
  %v250 = vmax.f32 %v226, 0.0
  %v251 = vmax.f32 %v229, 0.0
  %v252 = vmax.f32 %v234, 0.0
  %v253 = vmax.f32 %v237, 0.0
  %v254 = vmax.f32 %v242, 0.0
  %v255 = vmax.f32 %v245, 0.0
  %256 = vst.msk [vmem:[%s7] sm:$0xff] %vm170, %v248
  %257 = vst.msk [vmem:[%s7 + $0x8] sm:$0xff] %vm170, %v249
  %258 = vst.msk [vmem:[%s7 + $0x10] sm:$0xff] %vm170, %v250
  %259 = vst.msk [vmem:[%s7 + $0x18] sm:$0xff] %vm170, %v251
  %260 = vst.msk [vmem:[%s7 + $0x20] sm:$0xff] %vm170, %v252
  %261 = vst.msk [vmem:[%s7 + $0x28] sm:$0xff] %vm170, %v253
  %262 = vst.msk [vmem:[%s7 + $0x30] sm:$0xff] %vm170, %v254
  %263 = vst.msk [vmem:[%s7 + $0x38] sm:$0xff] %vm170, %v255
  %v264 = vsel %vm170, %v248, 0.0
  %v265 = vrot.slane %v264, 4
  %v266 = vadd.f32 %v264, %v265
  %v267 = vrot.slane %v266, 2
  %v268 = vadd.f32 %v266, %v267
  %v269 = vrot.slane %v268, 1
  %v270 = vadd.f32 %v268, %v269
  %v271 = vsel %vm170, %v249, 0.0
  %v272 = vrot.slane %v271, 4
  %v273 = vadd.f32 %v271, %v272
  %v274 = vrot.slane %v273, 2
  %v275 = vadd.f32 %v273, %v274
  %v276 = vrot.slane %v275, 1
  %v277 = vadd.f32 %v275, %v276
  %v278 = vsel %vm170, %v250, 0.0
  %v279 = vrot.slane %v278, 4
  %v280 = vadd.f32 %v278, %v279
  %v281 = vrot.slane %v280, 2
  %v282 = vadd.f32 %v280, %v281
  %v283 = vrot.slane %v282, 1
  %v284 = vadd.f32 %v282, %v283
  %v285 = vsel %vm170, %v251, 0.0
  %v286 = vrot.slane %v285, 4
  %v287 = vadd.f32 %v285, %v286
  %v288 = vrot.slane %v287, 2
  %v289 = vadd.f32 %v287, %v288
  %v290 = vrot.slane %v289, 1
  %v291 = vadd.f32 %v289, %v290
  %v292 = vsel %vm170, %v252, 0.0
  %v293 = vrot.slane %v292, 4
  %v294 = vadd.f32 %v292, %v293
  %v295 = vrot.slane %v294, 2
  %v296 = vadd.f32 %v294, %v295
  %v297 = vrot.slane %v296, 1
  %v298 = vadd.f32 %v296, %v297
  %v299 = vsel %vm170, %v253, 0.0
  %v300 = vrot.slane %v299, 4
  %v301 = vadd.f32 %v299, %v300
  %v302 = vrot.slane %v301, 2
  %v303 = vadd.f32 %v301, %v302
  %v304 = vrot.slane %v303, 1
  %v305 = vadd.f32 %v303, %v304
  %v306 = vsel %vm170, %v254, 0.0
  %v307 = vrot.slane %v306, 4
  %v308 = vadd.f32 %v306, %v307
  %v309 = vrot.slane %v308, 2
  %v310 = vadd.f32 %v308, %v309
  %v311 = vrot.slane %v310, 1
  %v312 = vadd.f32 %v310, %v311
  %v313 = vsel %vm170, %v255, 0.0
  %v314 = vrot.slane %v313, 4
  %v315 = vadd.f32 %v313, %v314
  %v316 = vrot.slane %v315, 2
  %v317 = vadd.f32 %v315, %v316
  %v318 = vrot.slane %v317, 1
  %v319 = vadd.f32 %v317, %v318
  %v320 = vrcp.pop 8.0
  %v321 = vmul.f32 %v270, %v320
  %v322 = vmul.f32 %v277, %v320
  %v323 = vmul.f32 %v284, %v320
  %v324 = vmul.f32 %v291, %v320
  %v325 = vmul.f32 %v298, %v320
  %v326 = vmul.f32 %v305, %v320
  %v327 = vmul.f32 %v312, %v320
  %v328 = vmul.f32 %v319, %v320
  %vm337 = vcmask 1041409
  %v338 = vsel %vm337, %v322, %v321
  %vm339 = vcmask 1042434
  %v340 = vsel %vm339, %v323, %v338
  %vm341 = vcmask 1043459
  %v342 = vsel %vm341, %v324, %v340
  %vm343 = vcmask 1044484
  %v344 = vsel %vm343, %v325, %v342
  %vm345 = vcmask 1045509
  %v346 = vsel %vm345, %v326, %v344
  %vm347 = vcmask 1046534
  %v348 = vsel %vm347, %v327, %v346
  %vm349 = vcmask 1047559
  %v350 = vsel %vm349, %v328, %v348
  %352 = vst.msk [vmem:[%s8] sm:$0xff] %vm170, %v350
  %v353 = vld [vmem:[%s5] sm:$0xff]
  %v354 = vld [vmem:[%s5 + $0x8] sm:$0xff]
  %v355 = vld [vmem:[%s5 + $0x10] sm:$0xff]
  %v356 = vld [vmem:[%s5 + $0x18] sm:$0xff]
  %v357 = vld [vmem:[%s6] sm:$0x1]
  %v359 = vlaneseq
  %v360 = vshrl.u32 %v359, 7
  %v361 = vsub.s32 0, %v360
  %v362 = vrot.slane %v357, %v361
  %v364 = vsel %vm170, %v350, 0
  %366 = vmatprep.subr.mxu0 0.0
  %367 = vmatpush1.msra.mxu0 %v353
  %368 = vmatprep.subr.mxu0 0.0
  %369 = vmatpush1.msra.mxu0 %v354
  %370 = vmatprep.subr.mxu0 0.0
  %371 = vmatpush1.msra.mxu0 %v355
  %372 = vmatprep.subr.mxu0 0.0
  %373 = vmatpush1.msra.mxu0 %v356
  %374 = vmatprep.subr.mxu0 0.0
  %375 = vmatpush1.msra.mxu0 0.0
  %376 = vmatprep.subr.mxu0 0.0
  %377 = vmatpush1.msra.mxu0 0.0
  %378 = vmatprep.subr.mxu0 0.0
  %379 = vmatpush1.msra.mxu0 0.0
  %380 = vmatprep.subr.mxu0 0.0
  %381 = vmatpush1.msra.mxu0 0.0
  %382 = vmatprep.subr.mxu0 0.0
  %383 = vmatpush1.msra.mxu0 0.0
  %384 = vmatprep.subr.mxu0 0.0
  %385 = vmatpush1.msra.mxu0 0.0
  %386 = vmatprep.subr.mxu0 0.0
  %387 = vmatpush1.msra.mxu0 0.0
  %388 = vmatprep.subr.mxu0 0.0
  %389 = vmatpush1.msra.mxu0 0.0
  %390 = vmatprep.subr.mxu0 0.0
  %391 = vmatpush1.msra.mxu0 0.0
  %392 = vmatprep.subr.mxu0 0.0
  %393 = vmatpush1.msra.mxu0 0.0
  %394 = vmatprep.subr.mxu0 0.0
  %395 = vmatpush1.msra.mxu0 0.0
  %396 = vmatprep.subr.mxu0 0.0
  %397 = vmatpush1.msra.mxu0 0.0
  %398 = vmatprep.subr.mxu0 0.0
  %399 = vmatpush1.msra.mxu0 0.0
  %400 = vmatprep.subr.mxu0 0.0
  %401 = vmatpush1.msra.mxu0 0.0
  %402 = vmatprep.subr.mxu0 0.0
  %403 = vmatpush1.msra.mxu0 0.0
  %404 = vmatprep.subr.mxu0 0.0
  %405 = vmatpush1.msra.mxu0 0.0
  %406 = vmatprep.subr.mxu0 0.0
  %407 = vmatpush1.msra.mxu0 0.0
  %408 = vmatprep.subr.mxu0 0.0
  %409 = vmatpush1.msra.mxu0 0.0
  %410 = vmatprep.subr.mxu0 0.0
  %411 = vmatpush1.msra.mxu0 0.0
  %412 = vmatprep.subr.mxu0 0.0
  %413 = vmatpush1.msra.mxu0 0.0
  %414 = vmatprep.subr.mxu0 0.0
  %415 = vmatpush1.msra.mxu0 0.0
  %416 = vmatprep.subr.mxu0 0.0
  %417 = vmatpush1.msra.mxu0 0.0
  %418 = vmatprep.subr.mxu0 0.0
  %419 = vmatpush1.msra.mxu0 0.0
  %420 = vmatprep.subr.mxu0 0.0
  %421 = vmatpush1.msra.mxu0 0.0
  %422 = vmatprep.subr.mxu0 0.0
  %423 = vmatpush1.msra.mxu0 0.0
  %424 = vmatprep.subr.mxu0 0.0
  %425 = vmatpush1.msra.mxu0 0.0
  %426 = vmatprep.subr.mxu0 0.0
  %427 = vmatpush1.msra.mxu0 0.0
  %428 = vmatprep.subr.mxu0 0.0
  %429 = vmatpush1.msra.mxu0 0.0
  %430 = vmatprep.mubr.f32.mxu0 0.0
  %431 = vmatmul.mubr.f32.gmra.mrb[0].mxu0 %v364
  %v432 = vpop.f32.mrb[0].mxu0
  %v433 = vadd.f32 %v362, %v432
  %v434 = vpop.f32.mrb[0].mxu0
  %435 = vdwg.mxu0
  %436 = vst [vmem:[%s9] sm:$0xff] %v433
  // Predicated region
  $region30: #{temporal_encoder_global_ar.2} parent=0 // pred_check
    _
  $region31: #{temporal_encoder_global_ar.2} parent=0 // pred_check_branch
    %438 = sbr.rel (0) target = $region33
  $region32: #{temporal_encoder_global_ar.2} parent=0 // pred_region
    _
  $region33: #{temporal_encoder_global_ar.2} parent=0 // pred_fallthru
    _
  // Predicated region
  $region34: #{temporal_encoder_global_ar.2} parent=0 // pred_check
    _
  $region35: #{temporal_encoder_global_ar.2} parent=0 // pred_check_branch
    %440 = sbr.rel (0) target = $region37
  $region36: #{temporal_encoder_global_ar.2} parent=0 // pred_region
    _
  $region37: #{temporal_encoder_global_ar.2} parent=0 // pred_fallthru
    _
  // Predicated region
  $region38: #{temporal_encoder_global_ar.2} parent=0 // pred_check
    _
  $region39: #{temporal_encoder_global_ar.2} parent=0 // pred_check_branch
    %442 = sbr.rel (0) target = $region41
  $region40: #{temporal_encoder_global_ar.2} parent=0 // pred_region
    _
  $region41: #{temporal_encoder_global_ar.2} parent=0 // pred_fallthru
    _
  // Predicated region
  $region42: #{temporal_encoder_global_ar.2} parent=0 // pred_check
    _
  $region43: #{temporal_encoder_global_ar.2} parent=0 // pred_check_branch
    %444 = sbr.rel (0) target = $region45
  $region44: #{temporal_encoder_global_ar.2} parent=0 // pred_region
    _
  $region45: #{temporal_encoder_global_ar.2} parent=0 // pred_fallthru
    _
  // Predicated region
  $region46: #{temporal_encoder_global_ar.2} parent=0 // pred_check
    _
  $region47: #{temporal_encoder_global_ar.2} parent=0 // pred_check_branch
    %446 = sbr.rel (0) target = $region49
  $region48: #{temporal_encoder_global_ar.2} parent=0 // pred_region
    _
  $region49: #{temporal_encoder_global_ar.2} parent=0 // pred_fallthru
    _
  // Predicated region
  $region50: #{temporal_encoder_global_ar.2} parent=0 // pred_check
    _
  $region51: #{temporal_encoder_global_ar.2} parent=0 // pred_check_branch
    %448 = sbr.rel (0) target = $region53
  $region52: #{temporal_encoder_global_ar.2} parent=0 // pred_region
    _
  $region53: #{temporal_encoder_global_ar.2} parent=0 // pred_fallthru
    _

</llo_original>
